<compile_context>
chip_gen: v5e
topology: v5e:2x2
jax: 0.10.0
libtpu: 0.0.40
codegen_flags: <defaults>
</compile_context>

<pallas_src>
import jax
import jax.numpy as jnp
from jax import lax
from jax.experimental import pallas as pl
from jax.experimental.pallas import tpu as pltpu


# ----------------------------------------------------------------------------
# Fused Pallas kernel
# ----------------------------------------------------------------------------
def _promptfl_fused_kernel(scale_ref, x_ref, w_img_ref, txt_ref, w_text_ref,
                           out_ref, img_acc_ref, txt_nrm_ref):
    """Grid axis 0 = K tiles of the image projection (reduction, 'arbitrary').

    scale_ref  : (1,)                   f32 SMEM  logit_scale (pre-exp)
    x_ref      : (B_pad, k_tile)        bf16      image pixels tile
    w_img_ref  : (k_tile, D_pad)        bf16      visual projection tile
    txt_ref    : (n_cls_pad, ctx_pad)   bf16      pooled EOT token embeddings
    w_text_ref : (ctx_pad, D_pad)       bf16      text projection
    out_ref    : (B_pad, n_cls_pad)     f32       scaled cosine logits
    img_acc_ref: (B_pad, D_pad)         f32       image-feature accumulator
    txt_nrm_ref: (n_cls_pad, D_pad)     bf16      L2-normalized text features
    """
    k = pl.program_id(0)

    @pl.when(k == 0)
    def _():
        img_acc_ref[...] = jnp.zeros_like(img_acc_ref)
        # Text projection + normalization hoisted to step 0 so the MXU matmul
        # overlaps with the (binding) w_img HBM stream instead of sitting in
        # the epilogue after the final K tile.
        txt = jnp.dot(txt_ref[...], w_text_ref[...],
                      preferred_element_type=jnp.float32)
        # rsqrt -> EUP slot. The max() guard only affects all-zero padded rows
        # (gives 0 instead of NaN); real rows match the unclamped reference.
        txt_n = txt * lax.rsqrt(
            jnp.maximum(jnp.sum(txt * txt, axis=-1, keepdims=True), 1e-30))
        txt_nrm_ref[...] = txt_n.astype(txt_nrm_ref.dtype)

    # Image-projection partial product for this K tile (bf16 MXU, f32 acc).
    img_acc_ref[...] += jnp.dot(x_ref[...], w_img_ref[...],
                                preferred_element_type=jnp.float32)

    @pl.when(k == pl.num_programs(0) - 1)
    def _():
        img = img_acc_ref[...]
        img_n = img * lax.rsqrt(
            jnp.maximum(jnp.sum(img * img, axis=-1, keepdims=True), 1e-30))

        # TODO(synk): reference CLIP training clamps exp(logit_scale) <= 100;
        # the PyTorch forward here does not, so we keep the unclamped exp.
        scale = jnp.exp(scale_ref[0])

        # Contract on the last dim of BOTH operands -> no in-kernel transpose.
        sims = lax.dot_general(
            img_n.astype(jnp.bfloat16), txt_nrm_ref[...],
            dimension_numbers=(((1,), (1,)), ((), ())),
            preferred_element_type=jnp.float32)
        out_ref[...] = scale * sims


# ----------------------------------------------------------------------------
# Padding helpers + one-time weight preparation
# ----------------------------------------------------------------------------
def _round_up(x, m):
    return ((x + m - 1) // m) * m


def _pad2d(x, rows, cols):
    r, c = x.shape
    return jnp.pad(x, ((0, rows - r), (0, cols - c)))


def prepare_promptfl_weights(w_img, w_text, *, k_tile=1024):
    """Pad + cast the static projection weights to bf16 ONCE (not per call)."""
    K, D = w_img.shape
    ctx_dim, D2 = w_text.shape
    assert D == D2

    d_pad = _round_up(D, 128)
    ctx_pad = _round_up(ctx_dim, 128)
    k_aligned = _round_up(K, 128)

    # Small-K fast path: a single grid step (no per-step overhead).  Otherwise
    # use large 128-multiple tiles (512-1024 reach ~85% of the HBM roofline).
    if k_aligned <= 4096:
        k_tile_eff = k_aligned
    else:
        k_tile_eff = min(_round_up(k_tile, 128), k_aligned)
    k_pad = _round_up(k_aligned, k_tile_eff)

    w_img_p = _pad2d(w_img, k_pad, d_pad).astype(jnp.bfloat16)
    w_text_p = _pad2d(w_text, ctx_pad, d_pad).astype(jnp.bfloat16)

    return dict(w_img_p=w_img_p, w_text_p=w_text_p,
                K=K, D=D, ctx_dim=ctx_dim,
                k_tile=k_tile_eff, k_pad=k_pad, d_pad=d_pad, ctx_pad=ctx_pad)


# ----------------------------------------------------------------------------
# Wrapper: single pallas_call
# ----------------------------------------------------------------------------
def promptfl_clip_fused(x_flat, pooled_text, prepared, logit_scale):
    B, K = x_flat.shape
    n_cls, ctx_dim = pooled_text.shape
    assert K == prepared["K"] and ctx_dim == prepared["ctx_dim"]

    k_tile = prepared["k_tile"]
    k_pad = prepared["k_pad"]
    d_pad = prepared["d_pad"]
    ctx_pad = prepared["ctx_pad"]
    n_k = k_pad // k_tile

    # bf16 packs 16 rows per vreg sublane group -> pad batch to 16, classes to
    # 128 lanes so the output is a lane-dense slab (full-width stores).
    b_pad = _round_up(max(B, 16), 16)
    n_cls_pad = _round_up(max(n_cls, 128), 128)

    # Per-call tensors are small (B rows / n_cls rows); the big weights were
    # padded+cast once in prepare_promptfl_weights.
    x_p = _pad2d(x_flat, b_pad, k_pad).astype(jnp.bfloat16)
    pooled_p = _pad2d(pooled_text, n_cls_pad, ctx_pad).astype(jnp.bfloat16)
    w_img_p = prepared["w_img_p"]
    w_text_p = prepared["w_text_p"]

    # VMEM budget: double-buffered pipelined K tiles + resident text operands +
    # output + scratch, with 2x headroom (clamped to 64 MiB for v7x).
    vmem_need = (
        2 * (b_pad * k_tile + k_tile * d_pad) * 2          # pipelined bf16 K tiles
        + 2 * (n_cls_pad * ctx_pad + ctx_pad * d_pad) * 2  # resident text operands
        + 2 * b_pad * n_cls_pad * 4                        # f32 output
        + b_pad * d_pad * 4                                # f32 image accumulator
        + n_cls_pad * d_pad * 2)                           # bf16 text-feature scratch
    vmem_limit = int(min(max(2 * vmem_need, 8 << 20), 64 << 20))

    flops = int(2 * (b_pad * k_pad * d_pad            # image projection
                     + n_cls_pad * ctx_pad * d_pad    # text projection
                     + b_pad * n_cls_pad * d_pad))    # similarity
    bytes_accessed = int(
        (x_p.size + w_img_p.size + pooled_p.size + w_text_p.size) * 2
        + b_pad * n_cls_pad * 4)
    cost = pl.CostEstimate(flops=flops,
                           transcendentals=int(b_pad + n_cls_pad + 1),
                           bytes_accessed=bytes_accessed)

    # TODO(synk): on v7x, split d_pad across the two TensorCores with a leading
    # 'parallel' grid axis (cross-D norms/similarity in a small follow-up step).
    # TODO(synk): for very large n_cls, single-buffer the constant-index-map
    # text operands (pipeline_mode) or DMA them manually at k==0 to save VMEM.
    grid_spec = pltpu.PrefetchScalarGridSpec(
        num_scalar_prefetch=0,
        grid=(n_k,),
        in_specs=[
            pl.BlockSpec(memory_space=pltpu.MemorySpace.SMEM),     # logit_scale
            pl.BlockSpec((b_pad, k_tile), lambda k: (0, k)),       # image pixels
            pl.BlockSpec((k_tile, d_pad), lambda k: (k, 0)),       # w_img tile
            pl.BlockSpec((n_cls_pad, ctx_pad), lambda k: (0, 0)),  # pooled text
            pl.BlockSpec((ctx_pad, d_pad), lambda k: (0, 0)),      # w_text
        ],
        out_specs=pl.BlockSpec((b_pad, n_cls_pad), lambda k: (0, 0)),
        scratch_shapes=[
            pltpu.VMEM((b_pad, d_pad), jnp.float32),        # image-feature acc
            pltpu.VMEM((n_cls_pad, d_pad), jnp.bfloat16),   # normalized text feats
        ],
    )

    logits_pad = pl.pallas_call(
        _promptfl_fused_kernel,
        out_shape=jax.ShapeDtypeStruct((b_pad, n_cls_pad), jnp.float32),
        grid_spec=grid_spec,
        compiler_params=pltpu.CompilerParams(
            dimension_semantics=("arbitrary",),   # K axis is a reduction
            vmem_limit_bytes=vmem_limit),
        cost_estimate=cost,
    )(logit_scale, x_p, w_img_p, pooled_p, w_text_p)

    return logits_pad[:B, :n_cls]


# ----------------------------------------------------------------------------
# Module glue (plain JAX; not hot path)
# ----------------------------------------------------------------------------
def prompt_learner_forward(ctx, token_prefix, token_suffix):
    """PromptLearner.forward, class_specific_context=False, position='end'."""
    n_cls = token_prefix.shape[0]
    ctx_e = jnp.broadcast_to(ctx[None, :, :], (n_cls,) + ctx.shape)
    # prompts: (n_cls, 1 + n_ctx + suffix_len, ctx_dim)
    return jnp.concatenate([token_prefix, ctx_e, token_suffix], axis=1)


def promptfl_clip_forward(image, params, prepared):
    # TODO(synk): the real clip_model.visual is a full ViT/ResNet; it is
    # reduced to a single linear patch projection whose matmul runs (K-tiled)
    # inside the fused Pallas kernel.
    B = image.shape[0]
    x_flat = image.reshape(B, -1).astype(jnp.float32)

    prompts = prompt_learner_forward(params["ctx"],
                                     params["token_prefix"],
                                     params["token_suffix"])

    # TODO(synk): the real TextEncoder runs the CLIP text transformer +
    # ln_final; only the EOT-token gather + text_projection hot path is kept
    # (the projection matmul runs inside the fused Pallas kernel).
    eot_idx = jnp.argmax(params["tokenized_prompts"], axis=-1)        # (n_cls,)
    pooled = jnp.take_along_axis(prompts, eot_idx[:, None, None], axis=1)[:, 0, :]

    return promptfl_clip_fused(x_flat, pooled, prepared, params["logit_scale"])


def promptfl_clip_reference(image, params):
    """Pure-JAX f32 reference of the same reduced forward pass."""
    B = image.shape[0]
    x_flat = image.reshape(B, -1).astype(jnp.float32)
    prompts = prompt_learner_forward(params["ctx"], params["token_prefix"],
                                     params["token_suffix"])
    eot_idx = jnp.argmax(params["tokenized_prompts"], axis=-1)
    pooled = jnp.take_along_axis(prompts, eot_idx[:, None, None], axis=1)[:, 0, :]
    img = x_flat @ params["w_img"]
    txt = pooled @ params["w_text"]
    img = img / jnp.linalg.norm(img, axis=-1, keepdims=True)
    txt = txt / jnp.linalg.norm(txt, axis=-1, keepdims=True)
    return jnp.exp(params["logit_scale"][0]) * img @ txt.T


# ----------------------------------------------------------------------------
# Deterministic synthetic parameter / input construction
# ----------------------------------------------------------------------------
def make_params(key, *, n_cls, n_ctx, ctx_dim, seq_len, embed_dim, in_feats):
    k_ctx, k_pre, k_suf, k_wimg, k_wtxt = jax.random.split(key, 5)

    # ctx parameter: normal(std=0.02) as in nn.init.normal_(ctx_vectors, std=0.02)
    ctx = 0.02 * jax.random.normal(k_ctx, (n_ctx, ctx_dim), jnp.float32)

    # token_prefix: embedding[:, :1, :]; token_suffix: embedding[:, 1+n_ctx:, :]
    token_prefix = jax.random.normal(k_pre, (n_cls, 1, ctx_dim), jnp.float32)
    suffix_len = seq_len - 1 - n_ctx
    token_suffix = jax.random.normal(k_suf, (n_cls, suffix_len, ctx_dim), jnp.float32)

    # synthetic tokenized prompts: [SOT, ctx..., name..., EOT, pad...]
    name_lens = [1, 2, 1, 3][:n_cls]
    tok = []
    for nl in name_lens:
        row = [49406] + [343] * n_ctx + [100 + j for j in range(nl)] + [49407]
        row = row + [0] * (seq_len - len(row))
        tok.append(row)
    tokenized_prompts = jnp.array(tok, dtype=jnp.int32)

    w_img = jax.random.normal(k_wimg, (in_feats, embed_dim), jnp.float32) / jnp.sqrt(in_feats)
    w_text = jax.random.normal(k_wtxt, (ctx_dim, embed_dim), jnp.float32) / jnp.sqrt(ctx_dim)

    # CLIP default: logit_scale = log(1/0.07)
    logit_scale = jnp.array([jnp.log(1.0 / 0.07)], dtype=jnp.float32)

    return dict(ctx=ctx, token_prefix=token_prefix, token_suffix=token_suffix,
                tokenized_prompts=tokenized_prompts, w_img=w_img, w_text=w_text,
                logit_scale=logit_scale)


if __name__ == "__main__":
    # Small shapes consistent with the forward pass.
    B, C, H, W = 2, 4, 16, 16          # image (NCHW)
    n_cls, n_ctx, ctx_dim = 4, 4, 128  # prompt learner
    seq_len, embed_dim = 16, 128       # text sequence length / shared feature dim

    key = jax.random.PRNGKey(0)
    k_img, k_params = jax.random.split(key)

    image = jax.random.normal(k_img, (B, C, H, W), jnp.float32)
    params = make_params(k_params, n_cls=n_cls, n_ctx=n_ctx, ctx_dim=ctx_dim,
                         seq_len=seq_len, embed_dim=embed_dim,
                         in_feats=C * H * W)

    # One-time weight padding/casting (hoisted out of the per-call hot path).
    prepared = prepare_promptfl_weights(params["w_img"], params["w_text"])

    logits = promptfl_clip_forward(image, params, prepared)
    jax.block_until_ready(logits)
    assert logits.shape == (B, n_cls)
    assert bool(jnp.all(jnp.isfinite(logits)))

    # bf16 MXU operands -> validate against an f32 reference with a tolerance.
    ref = promptfl_clip_reference(image, params)
    assert bool(jnp.all(jnp.abs(logits - ref) <= 0.3 + 0.05 * jnp.abs(ref)))

    print("KERNEL_OK")
</pallas_src>

<mosaic_0001>
module attributes {stable_mosaic.version = 11 : i64} {
  func.func @_promptfl_fused_kernel(%arg0: i32, %arg1: memref<1xf32, #tpu.memory_space<smem>>, %arg2: memref<16x1024xbf16, #tpu.memory_space<vmem>>, %arg3: memref<1024x128xbf16, #tpu.memory_space<vmem>>, %arg4: memref<128x128xbf16, #tpu.memory_space<vmem>>, %arg5: memref<128x128xbf16, #tpu.memory_space<vmem>>, %arg6: memref<16x128xf32, #tpu.memory_space<vmem>>, %arg7: memref<16x128xf32, #tpu.memory_space<vmem>>, %arg8: memref<128x128xbf16, #tpu.memory_space<vmem>>) attributes {dimension_semantics = [#tpu.dimension_semantics<arbitrary>], iteration_bounds = array<i64: 1>, scalar_prefetch = 0 : i64, scratch_operands = 2 : i64, tpu.core_type = #tpu.core_type<tc>, window_params = [{transform_indices = @transform_0, window_bounds = array<i64: 1>}, {transform_indices = @transform_1, window_bounds = array<i64: 16, 1024>}, {transform_indices = @transform_2, window_bounds = array<i64: 1024, 128>}, {pipeline_mode = #tpu.pipeline_mode<synchronous>, transform_indices = @transform_3, window_bounds = array<i64: 128, 128>}, {pipeline_mode = #tpu.pipeline_mode<synchronous>, transform_indices = @transform_4, window_bounds = array<i64: 128, 128>}, {pipeline_mode = #tpu.pipeline_mode<synchronous>, transform_indices = @transform_5, window_bounds = array<i64: 16, 128>}]} {
    %c0_i32 = arith.constant 0 : i32
    %0 = arith.cmpi eq, %arg0, %c0_i32 : i32
    %1 = arith.extui %0 : i1 to i32
    %c0_i32_0 = arith.constant 0 : i32
    %2 = arith.cmpi ne, %1, %c0_i32_0 : i32
    scf.if %2 {
      %cst_10 = arith.constant 0.000000e+00 : f32
      %12 = vector.broadcast %cst_10 : f32 to vector<16x128xf32>
      %c0_11 = arith.constant 0 : index
      %c0_12 = arith.constant 0 : index
      %13 = vector.load %arg7[%c0_11, %c0_12] : memref<16x128xf32, #tpu.memory_space<vmem>>, vector<16x128xf32>
      tpu.vector_store %arg7[%c0_11, %c0_12], %12 {strides = array<i32>} : memref<16x128xf32, #tpu.memory_space<vmem>>, vector<16x128xf32>,
      %c0_13 = arith.constant 0 : index
      %c0_14 = arith.constant 0 : index
      %14 = vector.load %arg4[%c0_13, %c0_14] : memref<128x128xbf16, #tpu.memory_space<vmem>>, vector<128x128xbf16>
      %c0_15 = arith.constant 0 : index
      %c0_16 = arith.constant 0 : index
      %15 = vector.load %arg5[%c0_15, %c0_16] : memref<128x128xbf16, #tpu.memory_space<vmem>>, vector<128x128xbf16>
      %cst_17 = arith.constant dense<0.000000e+00> : vector<128x128xf32>
      %16 = tpu.matmul %14, %15, %cst_17 {dimension_numbers = #tpu.dot_dimension_numbers<[1], [0], [0], [1], [0, 0, 1, 1], [], []>} : vector<128x128xbf16>, vector<128x128xbf16>, vector<128x128xf32> -> vector<128x128xf32>
      %17 = arith.mulf %16, %16 : vector<128x128xf32>
      %cst_18 = arith.constant dense<0.000000e+00> : vector<128xf32>
      %18 = vector.multi_reduction <add>, %17, %cst_18 [1] : vector<128x128xf32> to vector<128xf32>
      %19 = vector.shape_cast %18 : vector<128xf32> to vector<128x1xf32>
      %cst_19 = arith.constant 1.000000e-30 : f32
      %20 = vector.broadcast %cst_19 : f32 to vector<128x1xf32>
      %21 = arith.maximumf %19, %20 : vector<128x1xf32>
      %22 = math.rsqrt %21 : vector<128x1xf32>
      %23 = vector.broadcast %22 : vector<128x1xf32> to vector<128x128xf32>
      %24 = arith.mulf %16, %23 : vector<128x128xf32>
      %25 = arith.truncf %24 : vector<128x128xf32> to vector<128x128xbf16>
      %c0_20 = arith.constant 0 : index
      %c0_21 = arith.constant 0 : index
      %26 = vector.load %arg8[%c0_20, %c0_21] : memref<128x128xbf16, #tpu.memory_space<vmem>>, vector<128x128xbf16>
      tpu.vector_store %arg8[%c0_20, %c0_21], %25 {strides = array<i32>} : memref<128x128xbf16, #tpu.memory_space<vmem>>, vector<128x128xbf16>,
    } else {
    }
    %c0 = arith.constant 0 : index
    %c0_1 = arith.constant 0 : index
    %3 = vector.load %arg7[%c0, %c0_1] : memref<16x128xf32, #tpu.memory_space<vmem>>, vector<16x128xf32>
    %c0_2 = arith.constant 0 : index
    %c0_3 = arith.constant 0 : index
    %4 = vector.load %arg2[%c0_2, %c0_3] : memref<16x1024xbf16, #tpu.memory_space<vmem>>, vector<16x1024xbf16>
    %c0_4 = arith.constant 0 : index
    %c0_5 = arith.constant 0 : index
    %5 = vector.load %arg3[%c0_4, %c0_5] : memref<1024x128xbf16, #tpu.memory_space<vmem>>, vector<1024x128xbf16>
    %cst = arith.constant dense<0.000000e+00> : vector<16x128xf32>
    %6 = tpu.matmul %4, %5, %cst {dimension_numbers = #tpu.dot_dimension_numbers<[1], [0], [0], [1], [0, 0, 1, 1], [], []>} : vector<16x1024xbf16>, vector<1024x128xbf16>, vector<16x128xf32> -> vector<16x128xf32>
    %7 = arith.addf %3, %6 : vector<16x128xf32>
    %c0_6 = arith.constant 0 : index
    %c0_7 = arith.constant 0 : index
    %8 = vector.load %arg7[%c0_6, %c0_7] : memref<16x128xf32, #tpu.memory_space<vmem>>, vector<16x128xf32>
    tpu.vector_store %arg7[%c0_6, %c0_7], %7 {strides = array<i32>} : memref<16x128xf32, #tpu.memory_space<vmem>>, vector<16x128xf32>,
    %c0_i32_8 = arith.constant 0 : i32
    %9 = arith.cmpi eq, %arg0, %c0_i32_8 : i32
    %10 = arith.extui %9 : i1 to i32
    %c0_i32_9 = arith.constant 0 : i32
    %11 = arith.cmpi ne, %10, %c0_i32_9 : i32
    scf.if %11 {
      %c0_10 = arith.constant 0 : index
      %c0_11 = arith.constant 0 : index
      %12 = vector.load %arg7[%c0_10, %c0_11] : memref<16x128xf32, #tpu.memory_space<vmem>>, vector<16x128xf32>
      %13 = arith.mulf %12, %12 : vector<16x128xf32>
      %cst_12 = arith.constant dense<0.000000e+00> : vector<16xf32>
      %14 = vector.multi_reduction <add>, %13, %cst_12 [1] : vector<16x128xf32> to vector<16xf32>
      %15 = vector.shape_cast %14 : vector<16xf32> to vector<16x1xf32>
      %cst_13 = arith.constant 1.000000e-30 : f32
      %16 = vector.broadcast %cst_13 : f32 to vector<16x1xf32>
      %17 = arith.maximumf %15, %16 : vector<16x1xf32>
      %18 = math.rsqrt %17 : vector<16x1xf32>
      %19 = vector.broadcast %18 : vector<16x1xf32> to vector<16x128xf32>
      %20 = arith.mulf %12, %19 : vector<16x128xf32>
      %c0_14 = arith.constant 0 : index
      %21 = memref.load %arg1[%c0_14] : memref<1xf32, #tpu.memory_space<smem>>
      %22 = math.exp %21 : f32
      %23 = arith.truncf %20 : vector<16x128xf32> to vector<16x128xbf16>
      %c0_15 = arith.constant 0 : index
      %c0_16 = arith.constant 0 : index
      %24 = vector.load %arg8[%c0_15, %c0_16] : memref<128x128xbf16, #tpu.memory_space<vmem>>, vector<128x128xbf16>
      %cst_17 = arith.constant dense<0.000000e+00> : vector<16x128xf32>
      %25 = tpu.matmul %23, %24, %cst_17 {dimension_numbers = #tpu.dot_dimension_numbers<[1], [1], [0], [0], [0, 0, 1, 0], [], []>} : vector<16x128xbf16>, vector<128x128xbf16>, vector<16x128xf32> -> vector<16x128xf32>
      %26 = vector.broadcast %22 : f32 to vector<16x128xf32>
      %27 = arith.mulf %26, %25 : vector<16x128xf32>
      %c0_18 = arith.constant 0 : index
      %c0_19 = arith.constant 0 : index
      %28 = vector.load %arg6[%c0_18, %c0_19] : memref<16x128xf32, #tpu.memory_space<vmem>>, vector<16x128xf32>
      tpu.vector_store %arg6[%c0_18, %c0_19], %27 {strides = array<i32>} : memref<16x128xf32, #tpu.memory_space<vmem>>, vector<16x128xf32>,
    } else {
    }
    return
  }
  func.func @transform_0(%arg0: i32) -> i32 {
    %c0_i32 = arith.constant 0 : i32
    %c0_i32_0 = arith.constant 0 : i32
    return %c0_i32 : i32
  }
  func.func @transform_1(%arg0: i32) -> (i32, i32) {
    %c0_i32 = arith.constant 0 : i32
    %c0_i32_0 = arith.constant 0 : i32
    return %c0_i32, %arg0 : i32, i32
  }
  func.func @transform_2(%arg0: i32) -> (i32, i32) {
    %c0_i32 = arith.constant 0 : i32
    %c0_i32_0 = arith.constant 0 : i32
    return %arg0, %c0_i32 : i32, i32
  }
  func.func @transform_3(%arg0: i32) -> (i32, i32) {
    %c0_i32 = arith.constant 0 : i32
    %c0_i32_0 = arith.constant 0 : i32
    %c0_i32_1 = arith.constant 0 : i32
    return %c0_i32, %c0_i32_0 : i32, i32
  }
  func.func @transform_4(%arg0: i32) -> (i32, i32) {
    %c0_i32 = arith.constant 0 : i32
    %c0_i32_0 = arith.constant 0 : i32
    %c0_i32_1 = arith.constant 0 : i32
    return %c0_i32, %c0_i32_0 : i32, i32
  }
  func.func @transform_5(%arg0: i32) -> (i32, i32) {
    %c0_i32 = arith.constant 0 : i32
    %c0_i32_0 = arith.constant 0 : i32
    %c0_i32_1 = arith.constant 0 : i32
    return %c0_i32, %c0_i32_0 : i32, i32
  }
}

</mosaic_0001>

<llo_original>
// kernel: tpu_custom_call.1
$region0: #{tpu_custom_call.1}
  #allocation0 [shape = 'u32[]', space=smem, size = 0x4, offset = 0x4, fixed_abs, tag = 'smem constant byte address 0x4 - core index']
  #allocation1 [shape = 'u32[72,128]{1,0:T(1,128)}', space=vmem, size = 0x9000, scoped, tag = 'internal scratch']
  #allocation2 [shape = 'f32[16,128]{1,0:T(8,128)}', space=vmem, size = 0x2000, scoped, tag = 'scratch operand']
  #allocation3 [shape = 'bf16[128,128]{1,0:T(8,128)(2,1)}', space=vmem, size = 0x8000, scoped, tag = 'scratch operand']
  #allocation4 [shape = 'f32[1]{0:T(128)S(6)}', space=smem, size = 0x200, scoped, tag = 'scoped memory for tpu_custom_call.1']
  %s0 = inlined_call_operand.<no memory space> [shape: f32[1], index: 0, kind: input, shape index: {}]
  %s1 = inlined_call_operand.hbm [shape: bf16[16,1024], index: 1, kind: input, shape index: {}]
  %s2 = inlined_call_operand.hbm [shape: bf16[1024,128], index: 2, kind: input, shape index: {}]
  %s3 = inlined_call_operand.hbm [shape: bf16[128,128], index: 3, kind: input, shape index: {}]
  %s4 = inlined_call_operand.hbm [shape: bf16[128,128], index: 4, kind: input, shape index: {}]
  %s5 = inlined_call_operand.hbm [shape: f32[16,128], index: 5, kind: output, shape index: {}]
  %s6 = sld [smem:[#allocation0]]
  $region54: #{tpu_custom_call.1} parent=0
    _
  %s8 = ssub.s32 1, %s6
  %s9 = scalar_select 0, %s8, %s6
  %10 = sst [smem:[#allocation4]] %s0
  $region1: #{tpu_custom_call.1} parent=0
    #allocation5 [shape = 'u8[32768]{0}', space=vmem, size = 0x8000, scoped, tag = 'input window, operand 1, single buffered']
    #allocation6 [shape = 's32[1]{0}', space=sflag, size = 0x4, scoped, tag = 'scoped memory for tpu_custom_call.1']
    #allocation7 [shape = 's32[1]{0}', space=sflag, size = 0x4, scoped, tag = 'scoped memory for tpu_custom_call.1']
    #allocation8 [shape = 'u8[262144]{0}', space=vmem, size = 0x40000, scoped, tag = 'input window, operand 2, single buffered']
    #allocation9 [shape = 's32[1]{0}', space=sflag, size = 0x4, scoped, tag = 'scoped memory for tpu_custom_call.1']
    #allocation10 [shape = 'u8[32768]{0}', space=vmem, size = 0x8000, scoped, tag = 'input window, operand 3, single buffered']
    #allocation11 [shape = 'u8[32768]{0}', space=vmem, size = 0x8000, scoped, tag = 'input window, operand 4, single buffered']
    #allocation12 [shape = 's32[1]{0}', space=sflag, size = 0x4, scoped, tag = 'scoped memory for tpu_custom_call.1']
    #allocation13 [shape = 'u8[8192]{0}', space=vmem, size = 0x2000, scoped, tag = 'output window, operand 0, single buffered']
    %11 = vsyncpa [#allocation6], 0
    %12 = vsyncpa [#allocation9], 0
    %13 = vsyncpa [#allocation12], 0
    %14 = vsyncpa [#allocation7], 0
    // Predicated region
    $region2: #{tpu_custom_call.1} parent=1 // pred_check
      _
    $region3: #{tpu_custom_call.1} parent=1 // pred_check_branch
      %16 = sbr.rel (0) target = $region5
    $region4: #{tpu_custom_call.1} parent=1 // pred_region
      _
    $region5: #{tpu_custom_call.1} parent=1 // pred_fallthru
      _
    // Predicated region
    $region6: #{tpu_custom_call.1} parent=1 // pred_check
      _
    $region7: #{tpu_custom_call.1} parent=1 // pred_check_branch
      %18 = sbr.rel (0) target = $region9
    $region8: #{tpu_custom_call.1} parent=1 // pred_region
      %20 = vsyncadd [#allocation6], 0
      %s21 = sshll.u32 %s1, 4
      %s22 = int_to_ptr.hbm [resolvable:$true] %s21
      %s23 = sshll.u32 [#allocation5], 4
      %s24 = int_to_ptr.vmem [resolvable:$true] %s23
      %29 = dma.hbm_to_vmem [thread:$0]  %s22, 1024, %s24, [#allocation6], 512, 512, 32
    $region9: #{tpu_custom_call.1} parent=1 // pred_fallthru
      _
    // Predicated region
    $region10: #{tpu_custom_call.1} parent=1 // pred_check
      _
    $region11: #{tpu_custom_call.1} parent=1 // pred_check_branch
      %31 = sbr.rel (0) target = $region13
    $region12: #{tpu_custom_call.1} parent=1 // pred_region
      %33 = vsyncadd [#allocation9], 0
      %s34 = sshll.u32 %s2, 4
      %s35 = int_to_ptr.hbm [resolvable:$true] %s34
      %s36 = sshll.u32 [#allocation8], 4
      %s37 = int_to_ptr.vmem [resolvable:$true] %s36
      %42 = dma.hbm_to_vmem [thread:$0]  %s35, 8192, %s37, [#allocation9], 64, 64, 4
    $region13: #{tpu_custom_call.1} parent=1 // pred_fallthru
      _
    // Predicated region
    $region14: #{tpu_custom_call.1} parent=1 // pred_check
      _
    $region15: #{tpu_custom_call.1} parent=1 // pred_check_branch
      %44 = sbr.rel (0) target = $region17
    $region16: #{tpu_custom_call.1} parent=1 // pred_region
      %46 = vsyncadd [#allocation9], 0
      %s47 = sshll.u32 %s3, 4
      %s48 = int_to_ptr.hbm [resolvable:$true] %s47
      %s49 = sshll.u32 [#allocation10], 4
      %s50 = int_to_ptr.vmem [resolvable:$true] %s49
      %55 = dma.hbm_to_vmem [thread:$0]  %s48, 1024, %s50, [#allocation9], 64, 64, 4
    $region17: #{tpu_custom_call.1} parent=1 // pred_fallthru
      _
    // Predicated region
    $region18: #{tpu_custom_call.1} parent=1 // pred_check
      _
    $region19: #{tpu_custom_call.1} parent=1 // pred_check_branch
      %57 = sbr.rel (0) target = $region21
    $region20: #{tpu_custom_call.1} parent=1 // pred_region
      %59 = vsyncadd [#allocation12], 0
      %s60 = sshll.u32 %s4, 4
      %s61 = int_to_ptr.hbm [resolvable:$true] %s60
      %s62 = sshll.u32 [#allocation11], 4
      %s63 = int_to_ptr.vmem [resolvable:$true] %s62
      %68 = dma.hbm_to_vmem [thread:$0]  %s61, 1024, %s63, [#allocation12], 64, 64, 4
    $region21: #{tpu_custom_call.1} parent=1 // pred_fallthru
      _
    // Predicated region
    $region22: #{tpu_custom_call.1} parent=1 // pred_check
      _
    $region23: #{tpu_custom_call.1} parent=1 // pred_check_branch
      %70 = sbr.rel (0) target = $region25
    $region24: #{tpu_custom_call.1} parent=1 // pred_region
      %72 = dma.done [#allocation6], 1024
    $region25: #{tpu_custom_call.1} parent=1 // pred_fallthru
      _
    // Predicated region
    $region26: #{tpu_custom_call.1} parent=1 // pred_check
      _
    $region27: #{tpu_custom_call.1} parent=1 // pred_check_branch
      %74 = sbr.rel (0) target = $region29
    $region28: #{tpu_custom_call.1} parent=1 // pred_region
      %76 = dma.done [#allocation9], 8192
    $region29: #{tpu_custom_call.1} parent=1 // pred_fallthru
      _
    // Predicated region
    $region30: #{tpu_custom_call.1} parent=1 // pred_check
      _
    $region31: #{tpu_custom_call.1} parent=1 // pred_check_branch
      %78 = sbr.rel (0) target = $region33
    $region32: #{tpu_custom_call.1} parent=1 // pred_region
      %80 = dma.done [#allocation9], 1024
    $region33: #{tpu_custom_call.1} parent=1 // pred_fallthru
      _
    // Predicated region
    $region34: #{tpu_custom_call.1} parent=1 // pred_check
      _
    $region35: #{tpu_custom_call.1} parent=1 // pred_check_branch
      %82 = sbr.rel (0) target = $region37
    $region36: #{tpu_custom_call.1} parent=1 // pred_region
      %84 = dma.done [#allocation12], 1024
    $region37: #{tpu_custom_call.1} parent=1 // pred_fallthru
      _
    %p85 = scmp.eq.s32.totalorder 0, 0
    // Predicated region
    $region38: #{tpu_custom_call.1} parent=1 // pred_check
      %p86 = pneg %p85
    $region39: #{tpu_custom_call.1} parent=1 // pred_check_branch
      %88 = sbr.rel (%p86) target = $region41
    $region40: #{tpu_custom_call.1} parent=1 // pred_region
      %89 = vst [vmem:[#allocation2] sm:$0xff] 0.0
      %90 = vst [vmem:[#allocation2 + $0x8] sm:$0xff] 0.0
      %v91 = vld [vmem:[#allocation10] sm:$0xf]
      %v92 = vld [vmem:[#allocation10 + $0x4] sm:$0xf]
      %v93 = vld [vmem:[#allocation10 + $0x8] sm:$0xf]
      %v94 = vld [vmem:[#allocation10 + $0xc] sm:$0xf]
      %v95 = vld [vmem:[#allocation10 + $0x10] sm:$0xf]
      %v96 = vld [vmem:[#allocation10 + $0x14] sm:$0xf]
      %v97 = vld [vmem:[#allocation10 + $0x18] sm:$0xf]
      %v98 = vld [vmem:[#allocation10 + $0x1c] sm:$0xf]
      %v99 = vld [vmem:[#allocation10 + $0x20] sm:$0xf]
      %v100 = vld [vmem:[#allocation10 + $0x24] sm:$0xf]
      %v101 = vld [vmem:[#allocation10 + $0x28] sm:$0xf]
      %v102 = vld [vmem:[#allocation10 + $0x2c] sm:$0xf]
      %v103 = vld [vmem:[#allocation10 + $0x30] sm:$0xf]
      %v104 = vld [vmem:[#allocation10 + $0x34] sm:$0xf]
      %v105 = vld [vmem:[#allocation10 + $0x38] sm:$0xf]
      %v106 = vld [vmem:[#allocation10 + $0x3c] sm:$0xf]
      %v107 = vld [vmem:[#allocation11] sm:$0xf]
      %v108 = vld [vmem:[#allocation11 + $0x4] sm:$0xf]
      %v109 = vld [vmem:[#allocation11 + $0x8] sm:$0xf]
      %v110 = vld [vmem:[#allocation11 + $0xc] sm:$0xf]
      %v111 = vld [vmem:[#allocation11 + $0x10] sm:$0xf]
      %v112 = vld [vmem:[#allocation11 + $0x14] sm:$0xf]
      %v113 = vld [vmem:[#allocation11 + $0x18] sm:$0xf]
      %v114 = vld [vmem:[#allocation11 + $0x1c] sm:$0xf]
      %v115 = vld [vmem:[#allocation11 + $0x20] sm:$0xf]
      %v116 = vld [vmem:[#allocation11 + $0x24] sm:$0xf]
      %v117 = vld [vmem:[#allocation11 + $0x28] sm:$0xf]
      %v118 = vld [vmem:[#allocation11 + $0x2c] sm:$0xf]
      %v119 = vld [vmem:[#allocation11 + $0x30] sm:$0xf]
      %v120 = vld [vmem:[#allocation11 + $0x34] sm:$0xf]
      %v121 = vld [vmem:[#allocation11 + $0x38] sm:$0xf]
      %v122 = vld [vmem:[#allocation11 + $0x3c] sm:$0xf]
      %v139 = vunpack.c.l.b16 %v91
      %v140 = vunpack.c.l.b16 %v92
      %v141 = vunpack.c.l.b16 %v93
      %v142 = vunpack.c.l.b16 %v94
      %v143 = vunpack.c.l.b16 %v95
      %v144 = vunpack.c.l.b16 %v96
      %v145 = vunpack.c.l.b16 %v97
      %v146 = vunpack.c.l.b16 %v98
      %v147 = vunpack.c.l.b16 %v99
      %v148 = vunpack.c.l.b16 %v100
      %v149 = vunpack.c.l.b16 %v101
      %v150 = vunpack.c.l.b16 %v102
      %v151 = vunpack.c.l.b16 %v103
      %v152 = vunpack.c.l.b16 %v104
      %v153 = vunpack.c.l.b16 %v105
      %v154 = vunpack.c.l.b16 %v106
      %v155 = vpack.c.b16 %v140, %v139
      %v156 = vpack.c.b16 %v142, %v141
      %v157 = vpack.c.b16 %v144, %v143
      %v158 = vpack.c.b16 %v146, %v145
      %v159 = vpack.c.b16 %v148, %v147
      %v160 = vpack.c.b16 %v150, %v149
      %v161 = vpack.c.b16 %v152, %v151
      %v162 = vpack.c.b16 %v154, %v153
      %v187 = vunpack.c.l.b16 %v107
      %v188 = vunpack.c.l.b16 %v108
      %v189 = vunpack.c.l.b16 %v109
      %v190 = vunpack.c.l.b16 %v110
      %v191 = vunpack.c.l.b16 %v111
      %v192 = vunpack.c.l.b16 %v112
      %v193 = vunpack.c.l.b16 %v113
      %v194 = vunpack.c.l.b16 %v114
      %v195 = vunpack.c.l.b16 %v115
      %v196 = vunpack.c.l.b16 %v116
      %v197 = vunpack.c.l.b16 %v117
      %v198 = vunpack.c.l.b16 %v118
      %v199 = vunpack.c.l.b16 %v119
      %v200 = vunpack.c.l.b16 %v120
      %v201 = vunpack.c.l.b16 %v121
      %v202 = vunpack.c.l.b16 %v122
      %v203 = vpack.c.b16 %v188, %v187
      %v204 = vpack.c.b16 %v190, %v189
      %v205 = vpack.c.b16 %v192, %v191
      %v206 = vpack.c.b16 %v194, %v193
      %v207 = vpack.c.b16 %v196, %v195
      %v208 = vpack.c.b16 %v198, %v197
      %v209 = vpack.c.b16 %v200, %v199
      %v210 = vpack.c.b16 %v202, %v201
      %219 = vmatpush.bf16.msra.mxu0 %v210
      %220 = vmatpush.bf16.msra.mxu0 %v209
      %221 = vmatpush.bf16.msra.mxu0 %v208
      %222 = vmatpush.bf16.msra.mxu0 %v207
      %223 = vmatpush.bf16.msra.mxu0 %v206
      %224 = vmatpush.bf16.msra.mxu0 %v205
      %225 = vmatpush.bf16.msra.mxu0 %v204
      %226 = vmatpush.bf16.msra.mxu0 %v203
      %227 = vmatmul.bf16.gmra.mxu0 %v155
      %v228 = vpop.f32.mrf.mxu0
      %v229 = vadd.f32 0.0, %v228
      %v230 = vpop.f32.mrf.mxu0
      %v231 = vadd.f32 0.0, %v230
      %232 = vmatmul.bf16.gmra.mxu0 %v156
      %v233 = vpop.f32.mrf.mxu0
      %v234 = vadd.f32 0.0, %v233
      %v235 = vpop.f32.mrf.mxu0
      %v236 = vadd.f32 0.0, %v235
      %237 = vmatmul.bf16.gmra.mxu0 %v157
      %v238 = vpop.f32.mrf.mxu0
      %v239 = vadd.f32 0.0, %v238
      %v240 = vpop.f32.mrf.mxu0
      %v241 = vadd.f32 0.0, %v240
      %242 = vmatmul.bf16.gmra.mxu0 %v158
      %v243 = vpop.f32.mrf.mxu0
      %v244 = vadd.f32 0.0, %v243
      %v245 = vpop.f32.mrf.mxu0
      %v246 = vadd.f32 0.0, %v245
      %247 = vmatmul.bf16.gmra.mxu0 %v159
      %v248 = vpop.f32.mrf.mxu0
      %v249 = vadd.f32 0.0, %v248
      %v250 = vpop.f32.mrf.mxu0
      %v251 = vadd.f32 0.0, %v250
      %252 = vmatmul.bf16.gmra.mxu0 %v160
      %v253 = vpop.f32.mrf.mxu0
      %v254 = vadd.f32 0.0, %v253
      %v255 = vpop.f32.mrf.mxu0
      %v256 = vadd.f32 0.0, %v255
      %257 = vmatmul.bf16.gmra.mxu0 %v161
      %v258 = vpop.f32.mrf.mxu0
      %v259 = vadd.f32 0.0, %v258
      %v260 = vpop.f32.mrf.mxu0
      %v261 = vadd.f32 0.0, %v260
      %262 = vmatmul.bf16.gmra.mxu0 %v162
      %v263 = vpop.f32.mrf.mxu0
      %v264 = vadd.f32 0.0, %v263
      %v265 = vpop.f32.mrf.mxu0
      %v266 = vadd.f32 0.0, %v265
      %267 = vdwg.mxu0
      %v268 = vmul.f32 %v229, %v229
      %v269 = vmul.f32 %v231, %v231
      %v270 = vmul.f32 %v234, %v234
      %v271 = vmul.f32 %v236, %v236
      %v272 = vmul.f32 %v239, %v239
      %v273 = vmul.f32 %v241, %v241
      %v274 = vmul.f32 %v244, %v244
      %v275 = vmul.f32 %v246, %v246
      %v276 = vmul.f32 %v249, %v249
      %v277 = vmul.f32 %v251, %v251
      %v278 = vmul.f32 %v254, %v254
      %v279 = vmul.f32 %v256, %v256
      %v280 = vmul.f32 %v259, %v259
      %v281 = vmul.f32 %v261, %v261
      %v282 = vmul.f32 %v264, %v264
      %v283 = vmul.f32 %v266, %v266
      %284 = vadd.xlane.f32.xlu0 %v268
      %v285 = vpop.xlane.xlu0 %284
      %286 = vadd.xlane.f32.xlu0 %v269
      %v287 = vpop.xlane.xlu0 %286
      %288 = vadd.xlane.f32.xlu0 %v270
      %v289 = vpop.xlane.xlu0 %288
      %290 = vadd.xlane.f32.xlu0 %v271
      %v291 = vpop.xlane.xlu0 %290
      %292 = vadd.xlane.f32.xlu0 %v272
      %v293 = vpop.xlane.xlu0 %292
      %294 = vadd.xlane.f32.xlu0 %v273
      %v295 = vpop.xlane.xlu0 %294
      %296 = vadd.xlane.f32.xlu0 %v274
      %v297 = vpop.xlane.xlu0 %296
      %298 = vadd.xlane.f32.xlu0 %v275
      %v299 = vpop.xlane.xlu0 %298
      %300 = vadd.xlane.f32.xlu0 %v276
      %v301 = vpop.xlane.xlu0 %300
      %302 = vadd.xlane.f32.xlu0 %v277
      %v303 = vpop.xlane.xlu0 %302
      %304 = vadd.xlane.f32.xlu0 %v278
      %v305 = vpop.xlane.xlu0 %304
      %306 = vadd.xlane.f32.xlu0 %v279
      %v307 = vpop.xlane.xlu0 %306
      %308 = vadd.xlane.f32.xlu0 %v280
      %v309 = vpop.xlane.xlu0 %308
      %310 = vadd.xlane.f32.xlu0 %v281
      %v311 = vpop.xlane.xlu0 %310
      %312 = vadd.xlane.f32.xlu0 %v282
      %v313 = vpop.xlane.xlu0 %312
      %314 = vadd.xlane.f32.xlu0 %v283
      %v315 = vpop.xlane.xlu0 %314
      %v316 = vmax.f32 %v285, 1e-30
      %v317 = vmax.f32 %v287, 1e-30
      %v318 = vmax.f32 %v289, 1e-30
      %v319 = vmax.f32 %v291, 1e-30
      %v320 = vmax.f32 %v293, 1e-30
      %v321 = vmax.f32 %v295, 1e-30
      %v322 = vmax.f32 %v297, 1e-30
      %v323 = vmax.f32 %v299, 1e-30
      %v324 = vmax.f32 %v301, 1e-30
      %v325 = vmax.f32 %v303, 1e-30
      %v326 = vmax.f32 %v305, 1e-30
      %v327 = vmax.f32 %v307, 1e-30
      %v328 = vmax.f32 %v309, 1e-30
      %v329 = vmax.f32 %v311, 1e-30
      %v330 = vmax.f32 %v313, 1e-30
      %v331 = vmax.f32 %v315, 1e-30
      %v332 = vrsqrt.pop %v316
      %v333 = vmul.f32 %v332, %v316
      %v334 = vmul.f32 %v333, %v332
      %v335 = vmul.f32 0.5, %v334
      %v336 = vsub.f32 1.5, %v335
      %v337 = vmul.f32 %v332, %v336
      %vm338 = vweird.f32 %v316
      %vm339 = vweird.f32 %v332
      %vm340 = vmor %vm338, %vm339
      %v341 = vsel %vm340, %v332, %v337
      %v342 = vrsqrt.pop %v317
      %v343 = vmul.f32 %v342, %v317
      %v344 = vmul.f32 %v343, %v342
      %v345 = vmul.f32 0.5, %v344
      %v346 = vsub.f32 1.5, %v345
      %v347 = vmul.f32 %v342, %v346
      %vm348 = vweird.f32 %v317
      %vm349 = vweird.f32 %v342
      %vm350 = vmor %vm348, %vm349
      %v351 = vsel %vm350, %v342, %v347
      %v352 = vrsqrt.pop %v318
      %v353 = vmul.f32 %v352, %v318
      %v354 = vmul.f32 %v353, %v352
      %v355 = vmul.f32 0.5, %v354
      %v356 = vsub.f32 1.5, %v355
      %v357 = vmul.f32 %v352, %v356
      %vm358 = vweird.f32 %v318
      %vm359 = vweird.f32 %v352
      %vm360 = vmor %vm358, %vm359
      %v361 = vsel %vm360, %v352, %v357
      %v362 = vrsqrt.pop %v319
      %v363 = vmul.f32 %v362, %v319
      %v364 = vmul.f32 %v363, %v362
      %v365 = vmul.f32 0.5, %v364
      %v366 = vsub.f32 1.5, %v365
      %v367 = vmul.f32 %v362, %v366
      %vm368 = vweird.f32 %v319
      %vm369 = vweird.f32 %v362
      %vm370 = vmor %vm368, %vm369
      %v371 = vsel %vm370, %v362, %v367
      %v372 = vrsqrt.pop %v320
      %v373 = vmul.f32 %v372, %v320
      %v374 = vmul.f32 %v373, %v372
      %v375 = vmul.f32 0.5, %v374
      %v376 = vsub.f32 1.5, %v375
      %v377 = vmul.f32 %v372, %v376
      %vm378 = vweird.f32 %v320
      %vm379 = vweird.f32 %v372
      %vm380 = vmor %vm378, %vm379
      %v381 = vsel %vm380, %v372, %v377
      %v382 = vrsqrt.pop %v321
      %v383 = vmul.f32 %v382, %v321
      %v384 = vmul.f32 %v383, %v382
      %v385 = vmul.f32 0.5, %v384
      %v386 = vsub.f32 1.5, %v385
      %v387 = vmul.f32 %v382, %v386
      %vm388 = vweird.f32 %v321
      %vm389 = vweird.f32 %v382
      %vm390 = vmor %vm388, %vm389
      %v391 = vsel %vm390, %v382, %v387
      %v392 = vrsqrt.pop %v322
      %v393 = vmul.f32 %v392, %v322
      %v394 = vmul.f32 %v393, %v392
      %v395 = vmul.f32 0.5, %v394
      %v396 = vsub.f32 1.5, %v395
      %v397 = vmul.f32 %v392, %v396
      %vm398 = vweird.f32 %v322
      %vm399 = vweird.f32 %v392
      %vm400 = vmor %vm398, %vm399
      %v401 = vsel %vm400, %v392, %v397
      %v402 = vrsqrt.pop %v323
      %v403 = vmul.f32 %v402, %v323
      %v404 = vmul.f32 %v403, %v402
      %v405 = vmul.f32 0.5, %v404
      %v406 = vsub.f32 1.5, %v405
      %v407 = vmul.f32 %v402, %v406
      %vm408 = vweird.f32 %v323
      %vm409 = vweird.f32 %v402
      %vm410 = vmor %vm408, %vm409
      %v411 = vsel %vm410, %v402, %v407
      %v412 = vrsqrt.pop %v324
      %v413 = vmul.f32 %v412, %v324
      %v414 = vmul.f32 %v413, %v412
      %v415 = vmul.f32 0.5, %v414
      %v416 = vsub.f32 1.5, %v415
      %v417 = vmul.f32 %v412, %v416
      %vm418 = vweird.f32 %v324
      %vm419 = vweird.f32 %v412
      %vm420 = vmor %vm418, %vm419
      %v421 = vsel %vm420, %v412, %v417
      %v422 = vrsqrt.pop %v325
      %v423 = vmul.f32 %v422, %v325
      %v424 = vmul.f32 %v423, %v422
      %v425 = vmul.f32 0.5, %v424
      %v426 = vsub.f32 1.5, %v425
      %v427 = vmul.f32 %v422, %v426
      %vm428 = vweird.f32 %v325
      %vm429 = vweird.f32 %v422
      %vm430 = vmor %vm428, %vm429
      %v431 = vsel %vm430, %v422, %v427
      %v432 = vrsqrt.pop %v326
      %v433 = vmul.f32 %v432, %v326
      %v434 = vmul.f32 %v433, %v432
      %v435 = vmul.f32 0.5, %v434
      %v436 = vsub.f32 1.5, %v435
      %v437 = vmul.f32 %v432, %v436
      %vm438 = vweird.f32 %v326
      %vm439 = vweird.f32 %v432
      %vm440 = vmor %vm438, %vm439
      %v441 = vsel %vm440, %v432, %v437
      %v442 = vrsqrt.pop %v327
      %v443 = vmul.f32 %v442, %v327
      %v444 = vmul.f32 %v443, %v442
      %v445 = vmul.f32 0.5, %v444
      %v446 = vsub.f32 1.5, %v445
      %v447 = vmul.f32 %v442, %v446
      %vm448 = vweird.f32 %v327
      %vm449 = vweird.f32 %v442
      %vm450 = vmor %vm448, %vm449
      %v451 = vsel %vm450, %v442, %v447
      %v452 = vrsqrt.pop %v328
      %v453 = vmul.f32 %v452, %v328
      %v454 = vmul.f32 %v453, %v452
      %v455 = vmul.f32 0.5, %v454
      %v456 = vsub.f32 1.5, %v455
      %v457 = vmul.f32 %v452, %v456
      %vm458 = vweird.f32 %v328
      %vm459 = vweird.f32 %v452
      %vm460 = vmor %vm458, %vm459
      %v461 = vsel %vm460, %v452, %v457
      %v462 = vrsqrt.pop %v329
      %v463 = vmul.f32 %v462, %v329
      %v464 = vmul.f32 %v463, %v462
      %v465 = vmul.f32 0.5, %v464
      %v466 = vsub.f32 1.5, %v465
      %v467 = vmul.f32 %v462, %v466
      %vm468 = vweird.f32 %v329
      %vm469 = vweird.f32 %v462
      %vm470 = vmor %vm468, %vm469
      %v471 = vsel %vm470, %v462, %v467
      %v472 = vrsqrt.pop %v330
      %v473 = vmul.f32 %v472, %v330
      %v474 = vmul.f32 %v473, %v472
      %v475 = vmul.f32 0.5, %v474
      %v476 = vsub.f32 1.5, %v475
      %v477 = vmul.f32 %v472, %v476
      %vm478 = vweird.f32 %v330
      %vm479 = vweird.f32 %v472
      %vm480 = vmor %vm478, %vm479
      %v481 = vsel %vm480, %v472, %v477
      %v482 = vrsqrt.pop %v331
      %v483 = vmul.f32 %v482, %v331
      %v484 = vmul.f32 %v483, %v482
      %v485 = vmul.f32 0.5, %v484
      %v486 = vsub.f32 1.5, %v485
      %v487 = vmul.f32 %v482, %v486
      %vm488 = vweird.f32 %v331
      %vm489 = vweird.f32 %v482
      %vm490 = vmor %vm488, %vm489
      %v491 = vsel %vm490, %v482, %v487
      %v492 = vmul.f32 %v229, %v341
      %v493 = vmul.f32 %v231, %v351
      %v494 = vmul.f32 %v234, %v361
      %v495 = vmul.f32 %v236, %v371
      %v496 = vmul.f32 %v239, %v381
      %v497 = vmul.f32 %v241, %v391
      %v498 = vmul.f32 %v244, %v401
      %v499 = vmul.f32 %v246, %v411
      %v500 = vmul.f32 %v249, %v421
      %v501 = vmul.f32 %v251, %v431
      %v502 = vmul.f32 %v254, %v441
      %v503 = vmul.f32 %v256, %v451
      %v504 = vmul.f32 %v259, %v461
      %v505 = vmul.f32 %v261, %v471
      %v506 = vmul.f32 %v264, %v481
      %v507 = vmul.f32 %v266, %v491
      %v508 = vpack.c.bf16 %v492, %v492
      %v509 = vpack.c.bf16 %v493, %v493
      %v510 = vpack.c.bf16 %v494, %v494
      %v511 = vpack.c.bf16 %v495, %v495
      %v512 = vpack.c.bf16 %v496, %v496
      %v513 = vpack.c.bf16 %v497, %v497
      %v514 = vpack.c.bf16 %v498, %v498
      %v515 = vpack.c.bf16 %v499, %v499
      %v516 = vpack.c.bf16 %v500, %v500
      %v517 = vpack.c.bf16 %v501, %v501
      %v518 = vpack.c.bf16 %v502, %v502
      %v519 = vpack.c.bf16 %v503, %v503
      %v520 = vpack.c.bf16 %v504, %v504
      %v521 = vpack.c.bf16 %v505, %v505
      %v522 = vpack.c.bf16 %v506, %v506
      %v523 = vpack.c.bf16 %v507, %v507
      %524 = vst [vmem:[#allocation3] sm:$0xf] %v508
      %525 = vst [vmem:[#allocation3 + $0x4] sm:$0xf] %v509
      %526 = vst [vmem:[#allocation3 + $0x8] sm:$0xf] %v510
      %527 = vst [vmem:[#allocation3 + $0xc] sm:$0xf] %v511
      %528 = vst [vmem:[#allocation3 + $0x10] sm:$0xf] %v512
      %529 = vst [vmem:[#allocation3 + $0x14] sm:$0xf] %v513
      %530 = vst [vmem:[#allocation3 + $0x18] sm:$0xf] %v514
      %531 = vst [vmem:[#allocation3 + $0x1c] sm:$0xf] %v515
      %532 = vst [vmem:[#allocation3 + $0x20] sm:$0xf] %v516
      %533 = vst [vmem:[#allocation3 + $0x24] sm:$0xf] %v517
      %534 = vst [vmem:[#allocation3 + $0x28] sm:$0xf] %v518
      %535 = vst [vmem:[#allocation3 + $0x2c] sm:$0xf] %v519
      %536 = vst [vmem:[#allocation3 + $0x30] sm:$0xf] %v520
      %537 = vst [vmem:[#allocation3 + $0x34] sm:$0xf] %v521
      %538 = vst [vmem:[#allocation3 + $0x38] sm:$0xf] %v522
      %539 = vst [vmem:[#allocation3 + $0x3c] sm:$0xf] %v523
    $region41: #{tpu_custom_call.1} parent=1 // pred_fallthru
      _
    %v540 = vld [vmem:[#allocation2] sm:$0xff]
    %v541 = vld [vmem:[#allocation2 + $0x8] sm:$0xff]
    %v542 = vld [vmem:[#allocation5] sm:$0xff]
    %v543 = vld [vmem:[#allocation5 + $0x8] sm:$0xff]
    %v544 = vld [vmem:[#allocation5 + $0x10] sm:$0xff]
    %v545 = vld [vmem:[#allocation5 + $0x18] sm:$0xff]
    %v546 = vld [vmem:[#allocation5 + $0x20] sm:$0xff]
    %v547 = vld [vmem:[#allocation5 + $0x28] sm:$0xff]
    %v548 = vld [vmem:[#allocation5 + $0x30] sm:$0xff]
    %v549 = vld [vmem:[#allocation5 + $0x38] sm:$0xff]
    %v550 = vld [vmem:[#allocation8] sm:$0xf]
    %v551 = vld [vmem:[#allocation8 + $0x4] sm:$0xf]
    %v552 = vld [vmem:[#allocation8 + $0x8] sm:$0xf]
    %v553 = vld [vmem:[#allocation8 + $0xc] sm:$0xf]
    %v554 = vld [vmem:[#allocation8 + $0x10] sm:$0xf]
    %v555 = vld [vmem:[#allocation8 + $0x14] sm:$0xf]
    %v556 = vld [vmem:[#allocation8 + $0x18] sm:$0xf]
    %v557 = vld [vmem:[#allocation8 + $0x1c] sm:$0xf]
    %v558 = vld [vmem:[#allocation8 + $0x20] sm:$0xf]
    %v559 = vld [vmem:[#allocation8 + $0x24] sm:$0xf]
    %v560 = vld [vmem:[#allocation8 + $0x28] sm:$0xf]
    %v561 = vld [vmem:[#allocation8 + $0x2c] sm:$0xf]
    %v562 = vld [vmem:[#allocation8 + $0x30] sm:$0xf]
    %v563 = vld [vmem:[#allocation8 + $0x34] sm:$0xf]
    %v564 = vld [vmem:[#allocation8 + $0x38] sm:$0xf]
    %v565 = vld [vmem:[#allocation8 + $0x3c] sm:$0xf]
    %v566 = vld [vmem:[#allocation8 + $0x40] sm:$0xf]
    %v567 = vld [vmem:[#allocation8 + $0x44] sm:$0xf]
    %v568 = vld [vmem:[#allocation8 + $0x48] sm:$0xf]
    %v569 = vld [vmem:[#allocation8 + $0x4c] sm:$0xf]
    %v570 = vld [vmem:[#allocation8 + $0x50] sm:$0xf]
    %v571 = vld [vmem:[#allocation8 + $0x54] sm:$0xf]
    %v572 = vld [vmem:[#allocation8 + $0x58] sm:$0xf]
    %v573 = vld [vmem:[#allocation8 + $0x5c] sm:$0xf]
    %v574 = vld [vmem:[#allocation8 + $0x60] sm:$0xf]
    %v575 = vld [vmem:[#allocation8 + $0x64] sm:$0xf]
    %v576 = vld [vmem:[#allocation8 + $0x68] sm:$0xf]
    %v577 = vld [vmem:[#allocation8 + $0x6c] sm:$0xf]
    %v578 = vld [vmem:[#allocation8 + $0x70] sm:$0xf]
    %v579 = vld [vmem:[#allocation8 + $0x74] sm:$0xf]
    %v580 = vld [vmem:[#allocation8 + $0x78] sm:$0xf]
    %v581 = vld [vmem:[#allocation8 + $0x7c] sm:$0xf]
    %v582 = vld [vmem:[#allocation8 + $0x80] sm:$0xf]
    %v583 = vld [vmem:[#allocation8 + $0x84] sm:$0xf]
    %v584 = vld [vmem:[#allocation8 + $0x88] sm:$0xf]
    %v585 = vld [vmem:[#allocation8 + $0x8c] sm:$0xf]
    %v586 = vld [vmem:[#allocation8 + $0x90] sm:$0xf]
    %v587 = vld [vmem:[#allocation8 + $0x94] sm:$0xf]
    %v588 = vld [vmem:[#allocation8 + $0x98] sm:$0xf]
    %v589 = vld [vmem:[#allocation8 + $0x9c] sm:$0xf]
    %v590 = vld [vmem:[#allocation8 + $0xa0] sm:$0xf]
    %v591 = vld [vmem:[#allocation8 + $0xa4] sm:$0xf]
    %v592 = vld [vmem:[#allocation8 + $0xa8] sm:$0xf]
    %v593 = vld [vmem:[#allocation8 + $0xac] sm:$0xf]
    %v594 = vld [vmem:[#allocation8 + $0xb0] sm:$0xf]
    %v595 = vld [vmem:[#allocation8 + $0xb4] sm:$0xf]
    %v596 = vld [vmem:[#allocation8 + $0xb8] sm:$0xf]
    %v597 = vld [vmem:[#allocation8 + $0xbc] sm:$0xf]
    %v598 = vld [vmem:[#allocation8 + $0xc0] sm:$0xf]
    %v599 = vld [vmem:[#allocation8 + $0xc4] sm:$0xf]
    %v600 = vld [vmem:[#allocation8 + $0xc8] sm:$0xf]
    %v601 = vld [vmem:[#allocation8 + $0xcc] sm:$0xf]
    %v602 = vld [vmem:[#allocation8 + $0xd0] sm:$0xf]
    %v603 = vld [vmem:[#allocation8 + $0xd4] sm:$0xf]
    %v604 = vld [vmem:[#allocation8 + $0xd8] sm:$0xf]
    %v605 = vld [vmem:[#allocation8 + $0xdc] sm:$0xf]
    %v606 = vld [vmem:[#allocation8 + $0xe0] sm:$0xf]
    %v607 = vld [vmem:[#allocation8 + $0xe4] sm:$0xf]
    %v608 = vld [vmem:[#allocation8 + $0xe8] sm:$0xf]
    %v609 = vld [vmem:[#allocation8 + $0xec] sm:$0xf]
    %v610 = vld [vmem:[#allocation8 + $0xf0] sm:$0xf]
    %v611 = vld [vmem:[#allocation8 + $0xf4] sm:$0xf]
    %v612 = vld [vmem:[#allocation8 + $0xf8] sm:$0xf]
    %v613 = vld [vmem:[#allocation8 + $0xfc] sm:$0xf]
    %v614 = vld [vmem:[#allocation8 + $0x100] sm:$0xf]
    %v615 = vld [vmem:[#allocation8 + $0x104] sm:$0xf]
    %v616 = vld [vmem:[#allocation8 + $0x108] sm:$0xf]
    %v617 = vld [vmem:[#allocation8 + $0x10c] sm:$0xf]
    %v618 = vld [vmem:[#allocation8 + $0x110] sm:$0xf]
    %v619 = vld [vmem:[#allocation8 + $0x114] sm:$0xf]
    %v620 = vld [vmem:[#allocation8 + $0x118] sm:$0xf]
    %v621 = vld [vmem:[#allocation8 + $0x11c] sm:$0xf]
    %v622 = vld [vmem:[#allocation8 + $0x120] sm:$0xf]
    %v623 = vld [vmem:[#allocation8 + $0x124] sm:$0xf]
    %v624 = vld [vmem:[#allocation8 + $0x128] sm:$0xf]
    %v625 = vld [vmem:[#allocation8 + $0x12c] sm:$0xf]
    %v626 = vld [vmem:[#allocation8 + $0x130] sm:$0xf]
    %v627 = vld [vmem:[#allocation8 + $0x134] sm:$0xf]
    %v628 = vld [vmem:[#allocation8 + $0x138] sm:$0xf]
    %v629 = vld [vmem:[#allocation8 + $0x13c] sm:$0xf]
    %v630 = vld [vmem:[#allocation8 + $0x140] sm:$0xf]
    %v631 = vld [vmem:[#allocation8 + $0x144] sm:$0xf]
    %v632 = vld [vmem:[#allocation8 + $0x148] sm:$0xf]
    %v633 = vld [vmem:[#allocation8 + $0x14c] sm:$0xf]
    %v634 = vld [vmem:[#allocation8 + $0x150] sm:$0xf]
    %v635 = vld [vmem:[#allocation8 + $0x154] sm:$0xf]
    %v636 = vld [vmem:[#allocation8 + $0x158] sm:$0xf]
    %v637 = vld [vmem:[#allocation8 + $0x15c] sm:$0xf]
    %v638 = vld [vmem:[#allocation8 + $0x160] sm:$0xf]
    %v639 = vld [vmem:[#allocation8 + $0x164] sm:$0xf]
    %v640 = vld [vmem:[#allocation8 + $0x168] sm:$0xf]
    %v641 = vld [vmem:[#allocation8 + $0x16c] sm:$0xf]
    %v642 = vld [vmem:[#allocation8 + $0x170] sm:$0xf]
    %v643 = vld [vmem:[#allocation8 + $0x174] sm:$0xf]
    %v644 = vld [vmem:[#allocation8 + $0x178] sm:$0xf]
    %v645 = vld [vmem:[#allocation8 + $0x17c] sm:$0xf]
    %v646 = vld [vmem:[#allocation8 + $0x180] sm:$0xf]
    %v647 = vld [vmem:[#allocation8 + $0x184] sm:$0xf]
    %v648 = vld [vmem:[#allocation8 + $0x188] sm:$0xf]
    %v649 = vld [vmem:[#allocation8 + $0x18c] sm:$0xf]
    %v650 = vld [vmem:[#allocation8 + $0x190] sm:$0xf]
    %v651 = vld [vmem:[#allocation8 + $0x194] sm:$0xf]
    %v652 = vld [vmem:[#allocation8 + $0x198] sm:$0xf]
    %v653 = vld [vmem:[#allocation8 + $0x19c] sm:$0xf]
    %v654 = vld [vmem:[#allocation8 + $0x1a0] sm:$0xf]
    %v655 = vld [vmem:[#allocation8 + $0x1a4] sm:$0xf]
    %v656 = vld [vmem:[#allocation8 + $0x1a8] sm:$0xf]
    %v657 = vld [vmem:[#allocation8 + $0x1ac] sm:$0xf]
    %v658 = vld [vmem:[#allocation8 + $0x1b0] sm:$0xf]
    %v659 = vld [vmem:[#allocation8 + $0x1b4] sm:$0xf]
    %v660 = vld [vmem:[#allocation8 + $0x1b8] sm:$0xf]
    %v661 = vld [vmem:[#allocation8 + $0x1bc] sm:$0xf]
    %v662 = vld [vmem:[#allocation8 + $0x1c0] sm:$0xf]
    %v663 = vld [vmem:[#allocation8 + $0x1c4] sm:$0xf]
    %v664 = vld [vmem:[#allocation8 + $0x1c8] sm:$0xf]
    %v665 = vld [vmem:[#allocation8 + $0x1cc] sm:$0xf]
    %v666 = vld [vmem:[#allocation8 + $0x1d0] sm:$0xf]
    %v667 = vld [vmem:[#allocation8 + $0x1d4] sm:$0xf]
    %v668 = vld [vmem:[#allocation8 + $0x1d8] sm:$0xf]
    %v669 = vld [vmem:[#allocation8 + $0x1dc] sm:$0xf]
    %v670 = vld [vmem:[#allocation8 + $0x1e0] sm:$0xf]
    %v671 = vld [vmem:[#allocation8 + $0x1e4] sm:$0xf]
    %v672 = vld [vmem:[#allocation8 + $0x1e8] sm:$0xf]
    %v673 = vld [vmem:[#allocation8 + $0x1ec] sm:$0xf]
    %v674 = vld [vmem:[#allocation8 + $0x1f0] sm:$0xf]
    %v675 = vld [vmem:[#allocation8 + $0x1f4] sm:$0xf]
    %v676 = vld [vmem:[#allocation8 + $0x1f8] sm:$0xf]
    %v677 = vld [vmem:[#allocation8 + $0x1fc] sm:$0xf]
    %v686 = vunpack.c.l.b16 %v542
    %v687 = vunpack.c.h.b16 %v542
    %v688 = vunpack.c.l.b16 %v543
    %v689 = vunpack.c.h.b16 %v543
    %v690 = vunpack.c.l.b16 %v544
    %v691 = vunpack.c.h.b16 %v544
    %v692 = vunpack.c.l.b16 %v545
    %v693 = vunpack.c.h.b16 %v545
    %v694 = vunpack.c.l.b16 %v546
    %v695 = vunpack.c.h.b16 %v546
    %v696 = vunpack.c.l.b16 %v547
    %v697 = vunpack.c.h.b16 %v547
    %v698 = vunpack.c.l.b16 %v548
    %v699 = vunpack.c.h.b16 %v548
    %v700 = vunpack.c.l.b16 %v549
    %v701 = vunpack.c.h.b16 %v549
    %v702 = vpack.c.b16 %v694, %v686
    %v703 = vpack.c.b16 %v695, %v687
    %v704 = vpack.c.b16 %v696, %v688
    %v705 = vpack.c.b16 %v697, %v689
    %v706 = vpack.c.b16 %v698, %v690
    %v707 = vpack.c.b16 %v699, %v691
    %v708 = vpack.c.b16 %v700, %v692
    %v709 = vpack.c.b16 %v701, %v693
    %v846 = vunpack.c.l.b16 %v550
    %v847 = vunpack.c.l.b16 %v551
    %v848 = vunpack.c.l.b16 %v552
    %v849 = vunpack.c.l.b16 %v553
    %v850 = vunpack.c.l.b16 %v554
    %v851 = vunpack.c.l.b16 %v555
    %v852 = vunpack.c.l.b16 %v556
    %v853 = vunpack.c.l.b16 %v557
    %v854 = vunpack.c.l.b16 %v558
    %v855 = vunpack.c.l.b16 %v559
    %v856 = vunpack.c.l.b16 %v560
    %v857 = vunpack.c.l.b16 %v561
    %v858 = vunpack.c.l.b16 %v562
    %v859 = vunpack.c.l.b16 %v563
    %v860 = vunpack.c.l.b16 %v564
    %v861 = vunpack.c.l.b16 %v565
    %v862 = vunpack.c.l.b16 %v566
    %v863 = vunpack.c.l.b16 %v567
    %v864 = vunpack.c.l.b16 %v568
    %v865 = vunpack.c.l.b16 %v569
    %v866 = vunpack.c.l.b16 %v570
    %v867 = vunpack.c.l.b16 %v571
    %v868 = vunpack.c.l.b16 %v572
    %v869 = vunpack.c.l.b16 %v573
    %v870 = vunpack.c.l.b16 %v574
    %v871 = vunpack.c.l.b16 %v575
    %v872 = vunpack.c.l.b16 %v576
    %v873 = vunpack.c.l.b16 %v577
    %v874 = vunpack.c.l.b16 %v578
    %v875 = vunpack.c.l.b16 %v579
    %v876 = vunpack.c.l.b16 %v580
    %v877 = vunpack.c.l.b16 %v581
    %v878 = vunpack.c.l.b16 %v582
    %v879 = vunpack.c.l.b16 %v583
    %v880 = vunpack.c.l.b16 %v584
    %v881 = vunpack.c.l.b16 %v585
    %v882 = vunpack.c.l.b16 %v586
    %v883 = vunpack.c.l.b16 %v587
    %v884 = vunpack.c.l.b16 %v588
    %v885 = vunpack.c.l.b16 %v589
    %v886 = vunpack.c.l.b16 %v590
    %v887 = vunpack.c.l.b16 %v591
    %v888 = vunpack.c.l.b16 %v592
    %v889 = vunpack.c.l.b16 %v593
    %v890 = vunpack.c.l.b16 %v594
    %v891 = vunpack.c.l.b16 %v595
    %v892 = vunpack.c.l.b16 %v596
    %v893 = vunpack.c.l.b16 %v597
    %v894 = vunpack.c.l.b16 %v598
    %v895 = vunpack.c.l.b16 %v599
    %v896 = vunpack.c.l.b16 %v600
    %v897 = vunpack.c.l.b16 %v601
    %v898 = vunpack.c.l.b16 %v602
    %v899 = vunpack.c.l.b16 %v603
    %v900 = vunpack.c.l.b16 %v604
    %v901 = vunpack.c.l.b16 %v605
    %v902 = vunpack.c.l.b16 %v606
    %v903 = vunpack.c.l.b16 %v607
    %v904 = vunpack.c.l.b16 %v608
    %v905 = vunpack.c.l.b16 %v609
    %v906 = vunpack.c.l.b16 %v610
    %v907 = vunpack.c.l.b16 %v611
    %v908 = vunpack.c.l.b16 %v612
    %v909 = vunpack.c.l.b16 %v613
    %v910 = vunpack.c.l.b16 %v614
    %v911 = vunpack.c.l.b16 %v615
    %v912 = vunpack.c.l.b16 %v616
    %v913 = vunpack.c.l.b16 %v617
    %v914 = vunpack.c.l.b16 %v618
    %v915 = vunpack.c.l.b16 %v619
    %v916 = vunpack.c.l.b16 %v620
    %v917 = vunpack.c.l.b16 %v621
    %v918 = vunpack.c.l.b16 %v622
    %v919 = vunpack.c.l.b16 %v623
    %v920 = vunpack.c.l.b16 %v624
    %v921 = vunpack.c.l.b16 %v625
    %v922 = vunpack.c.l.b16 %v626
    %v923 = vunpack.c.l.b16 %v627
    %v924 = vunpack.c.l.b16 %v628
    %v925 = vunpack.c.l.b16 %v629
    %v926 = vunpack.c.l.b16 %v630
    %v927 = vunpack.c.l.b16 %v631
    %v928 = vunpack.c.l.b16 %v632
    %v929 = vunpack.c.l.b16 %v633
    %v930 = vunpack.c.l.b16 %v634
    %v931 = vunpack.c.l.b16 %v635
    %v932 = vunpack.c.l.b16 %v636
    %v933 = vunpack.c.l.b16 %v637
    %v934 = vunpack.c.l.b16 %v638
    %v935 = vunpack.c.l.b16 %v639
    %v936 = vunpack.c.l.b16 %v640
    %v937 = vunpack.c.l.b16 %v641
    %v938 = vunpack.c.l.b16 %v642
    %v939 = vunpack.c.l.b16 %v643
    %v940 = vunpack.c.l.b16 %v644
    %v941 = vunpack.c.l.b16 %v645
    %v942 = vunpack.c.l.b16 %v646
    %v943 = vunpack.c.l.b16 %v647
    %v944 = vunpack.c.l.b16 %v648
    %v945 = vunpack.c.l.b16 %v649
    %v946 = vunpack.c.l.b16 %v650
    %v947 = vunpack.c.l.b16 %v651
    %v948 = vunpack.c.l.b16 %v652
    %v949 = vunpack.c.l.b16 %v653
    %v950 = vunpack.c.l.b16 %v654
    %v951 = vunpack.c.l.b16 %v655
    %v952 = vunpack.c.l.b16 %v656
    %v953 = vunpack.c.l.b16 %v657
    %v954 = vunpack.c.l.b16 %v658
    %v955 = vunpack.c.l.b16 %v659
    %v956 = vunpack.c.l.b16 %v660
    %v957 = vunpack.c.l.b16 %v661
    %v958 = vunpack.c.l.b16 %v662
    %v959 = vunpack.c.l.b16 %v663
    %v960 = vunpack.c.l.b16 %v664
    %v961 = vunpack.c.l.b16 %v665
    %v962 = vunpack.c.l.b16 %v666
    %v963 = vunpack.c.l.b16 %v667
    %v964 = vunpack.c.l.b16 %v668
    %v965 = vunpack.c.l.b16 %v669
    %v966 = vunpack.c.l.b16 %v670
    %v967 = vunpack.c.l.b16 %v671
    %v968 = vunpack.c.l.b16 %v672
    %v969 = vunpack.c.l.b16 %v673
    %v970 = vunpack.c.l.b16 %v674
    %v971 = vunpack.c.l.b16 %v675
    %v972 = vunpack.c.l.b16 %v676
    %v973 = vunpack.c.l.b16 %v677
    %v974 = vpack.c.b16 %v847, %v846
    %v975 = vpack.c.b16 %v849, %v848
    %v976 = vpack.c.b16 %v851, %v850
    %v977 = vpack.c.b16 %v853, %v852
    %v978 = vpack.c.b16 %v855, %v854
    %v979 = vpack.c.b16 %v857, %v856
    %v980 = vpack.c.b16 %v859, %v858
    %v981 = vpack.c.b16 %v861, %v860
    %v982 = vpack.c.b16 %v863, %v862
    %v983 = vpack.c.b16 %v865, %v864
    %v984 = vpack.c.b16 %v867, %v866
    %v985 = vpack.c.b16 %v869, %v868
    %v986 = vpack.c.b16 %v871, %v870
    %v987 = vpack.c.b16 %v873, %v872
    %v988 = vpack.c.b16 %v875, %v874
    %v989 = vpack.c.b16 %v877, %v876
    %v990 = vpack.c.b16 %v879, %v878
    %v991 = vpack.c.b16 %v881, %v880
    %v992 = vpack.c.b16 %v883, %v882
    %v993 = vpack.c.b16 %v885, %v884
    %v994 = vpack.c.b16 %v887, %v886
    %v995 = vpack.c.b16 %v889, %v888
    %v996 = vpack.c.b16 %v891, %v890
    %v997 = vpack.c.b16 %v893, %v892
    %v998 = vpack.c.b16 %v895, %v894
    %v999 = vpack.c.b16 %v897, %v896
    %v1000 = vpack.c.b16 %v899, %v898
    %v1001 = vpack.c.b16 %v901, %v900
    %v1002 = vpack.c.b16 %v903, %v902
    %v1003 = vpack.c.b16 %v905, %v904
    %v1004 = vpack.c.b16 %v907, %v906
    %v1005 = vpack.c.b16 %v909, %v908
    %v1006 = vpack.c.b16 %v911, %v910
    %v1007 = vpack.c.b16 %v913, %v912
    %v1008 = vpack.c.b16 %v915, %v914
    %v1009 = vpack.c.b16 %v917, %v916
    %v1010 = vpack.c.b16 %v919, %v918
    %v1011 = vpack.c.b16 %v921, %v920
    %v1012 = vpack.c.b16 %v923, %v922
    %v1013 = vpack.c.b16 %v925, %v924
    %v1014 = vpack.c.b16 %v927, %v926
    %v1015 = vpack.c.b16 %v929, %v928
    %v1016 = vpack.c.b16 %v931, %v930
    %v1017 = vpack.c.b16 %v933, %v932
    %v1018 = vpack.c.b16 %v935, %v934
    %v1019 = vpack.c.b16 %v937, %v936
    %v1020 = vpack.c.b16 %v939, %v938
    %v1021 = vpack.c.b16 %v941, %v940
    %v1022 = vpack.c.b16 %v943, %v942
    %v1023 = vpack.c.b16 %v945, %v944
    %v1024 = vpack.c.b16 %v947, %v946
    %v1025 = vpack.c.b16 %v949, %v948
    %v1026 = vpack.c.b16 %v951, %v950
    %v1027 = vpack.c.b16 %v953, %v952
    %v1028 = vpack.c.b16 %v955, %v954
    %v1029 = vpack.c.b16 %v957, %v956
    %v1030 = vpack.c.b16 %v959, %v958
    %v1031 = vpack.c.b16 %v961, %v960
    %v1032 = vpack.c.b16 %v963, %v962
    %v1033 = vpack.c.b16 %v965, %v964
    %v1034 = vpack.c.b16 %v967, %v966
    %v1035 = vpack.c.b16 %v969, %v968
    %v1036 = vpack.c.b16 %v971, %v970
    %v1037 = vpack.c.b16 %v973, %v972
    %1102 = vmatpush.bf16.msra.mxu0 %v981
    %1103 = vmatpush.bf16.msra.mxu0 %v980
    %1104 = vmatpush.bf16.msra.mxu0 %v979
    %1105 = vmatpush.bf16.msra.mxu0 %v978
    %1106 = vmatpush.bf16.msra.mxu0 %v977
    %1107 = vmatpush.bf16.msra.mxu0 %v976
    %1108 = vmatpush.bf16.msra.mxu0 %v975
    %1109 = vmatpush.bf16.msra.mxu0 %v974
    %1110 = vmatmul.bf16.gmra.mxu0 %v702
    %v1111 = vpop.f32.mrf.mxu0
    %v1112 = vadd.f32 0.0, %v1111
    %v1113 = vpop.f32.mrf.mxu0
    %v1114 = vadd.f32 0.0, %v1113
    %1115 = vdwg.mxu0
    %1116 = vmatpush.bf16.msra.mxu0 %v989
    %1117 = vmatpush.bf16.msra.mxu0 %v988
    %1118 = vmatpush.bf16.msra.mxu0 %v987
    %1119 = vmatpush.bf16.msra.mxu0 %v986
    %1120 = vmatpush.bf16.msra.mxu0 %v985
    %1121 = vmatpush.bf16.msra.mxu0 %v984
    %1122 = vmatpush.bf16.msra.mxu0 %v983
    %1123 = vmatpush.bf16.msra.mxu0 %v982
    %1124 = vmatmul.bf16.gmra.mxu0 %v703
    %v1125 = vpop.f32.mrf.mxu0
    %v1126 = vadd.f32 %v1112, %v1125
    %v1127 = vpop.f32.mrf.mxu0
    %v1128 = vadd.f32 %v1114, %v1127
    %1129 = vdwg.mxu0
    %1130 = vmatpush.bf16.msra.mxu0 %v997
    %1131 = vmatpush.bf16.msra.mxu0 %v996
    %1132 = vmatpush.bf16.msra.mxu0 %v995
    %1133 = vmatpush.bf16.msra.mxu0 %v994
    %1134 = vmatpush.bf16.msra.mxu0 %v993
    %1135 = vmatpush.bf16.msra.mxu0 %v992
    %1136 = vmatpush.bf16.msra.mxu0 %v991
    %1137 = vmatpush.bf16.msra.mxu0 %v990
    %1138 = vmatmul.bf16.gmra.mxu0 %v704
    %v1139 = vpop.f32.mrf.mxu0
    %v1140 = vadd.f32 %v1126, %v1139
    %v1141 = vpop.f32.mrf.mxu0
    %v1142 = vadd.f32 %v1128, %v1141
    %1143 = vdwg.mxu0
    %1144 = vmatpush.bf16.msra.mxu0 %v1005
    %1145 = vmatpush.bf16.msra.mxu0 %v1004
    %1146 = vmatpush.bf16.msra.mxu0 %v1003
    %1147 = vmatpush.bf16.msra.mxu0 %v1002
    %1148 = vmatpush.bf16.msra.mxu0 %v1001
    %1149 = vmatpush.bf16.msra.mxu0 %v1000
    %1150 = vmatpush.bf16.msra.mxu0 %v999
    %1151 = vmatpush.bf16.msra.mxu0 %v998
    %1152 = vmatmul.bf16.gmra.mxu0 %v705
    %v1153 = vpop.f32.mrf.mxu0
    %v1154 = vadd.f32 %v1140, %v1153
    %v1155 = vpop.f32.mrf.mxu0
    %v1156 = vadd.f32 %v1142, %v1155
    %1157 = vdwg.mxu0
    %1158 = vmatpush.bf16.msra.mxu0 %v1013
    %1159 = vmatpush.bf16.msra.mxu0 %v1012
    %1160 = vmatpush.bf16.msra.mxu0 %v1011
    %1161 = vmatpush.bf16.msra.mxu0 %v1010
    %1162 = vmatpush.bf16.msra.mxu0 %v1009
    %1163 = vmatpush.bf16.msra.mxu0 %v1008
    %1164 = vmatpush.bf16.msra.mxu0 %v1007
    %1165 = vmatpush.bf16.msra.mxu0 %v1006
    %1166 = vmatmul.bf16.gmra.mxu0 %v706
    %v1167 = vpop.f32.mrf.mxu0
    %v1168 = vadd.f32 %v1154, %v1167
    %v1169 = vpop.f32.mrf.mxu0
    %v1170 = vadd.f32 %v1156, %v1169
    %1171 = vdwg.mxu0
    %1172 = vmatpush.bf16.msra.mxu0 %v1021
    %1173 = vmatpush.bf16.msra.mxu0 %v1020
    %1174 = vmatpush.bf16.msra.mxu0 %v1019
    %1175 = vmatpush.bf16.msra.mxu0 %v1018
    %1176 = vmatpush.bf16.msra.mxu0 %v1017
    %1177 = vmatpush.bf16.msra.mxu0 %v1016
    %1178 = vmatpush.bf16.msra.mxu0 %v1015
    %1179 = vmatpush.bf16.msra.mxu0 %v1014
    %1180 = vmatmul.bf16.gmra.mxu0 %v707
    %v1181 = vpop.f32.mrf.mxu0
    %v1182 = vadd.f32 %v1168, %v1181
    %v1183 = vpop.f32.mrf.mxu0
    %v1184 = vadd.f32 %v1170, %v1183
    %1185 = vdwg.mxu0
    %1186 = vmatpush.bf16.msra.mxu0 %v1029
    %1187 = vmatpush.bf16.msra.mxu0 %v1028
    %1188 = vmatpush.bf16.msra.mxu0 %v1027
    %1189 = vmatpush.bf16.msra.mxu0 %v1026
    %1190 = vmatpush.bf16.msra.mxu0 %v1025
    %1191 = vmatpush.bf16.msra.mxu0 %v1024
    %1192 = vmatpush.bf16.msra.mxu0 %v1023
    %1193 = vmatpush.bf16.msra.mxu0 %v1022
    %1194 = vmatmul.bf16.gmra.mxu0 %v708
    %v1195 = vpop.f32.mrf.mxu0
    %v1196 = vadd.f32 %v1182, %v1195
    %v1197 = vpop.f32.mrf.mxu0
    %v1198 = vadd.f32 %v1184, %v1197
    %1199 = vdwg.mxu0
    %1200 = vmatpush.bf16.msra.mxu0 %v1037
    %1201 = vmatpush.bf16.msra.mxu0 %v1036
    %1202 = vmatpush.bf16.msra.mxu0 %v1035
    %1203 = vmatpush.bf16.msra.mxu0 %v1034
    %1204 = vmatpush.bf16.msra.mxu0 %v1033
    %1205 = vmatpush.bf16.msra.mxu0 %v1032
    %1206 = vmatpush.bf16.msra.mxu0 %v1031
    %1207 = vmatpush.bf16.msra.mxu0 %v1030
    %1208 = vmatmul.bf16.gmra.mxu0 %v709
    %v1209 = vpop.f32.mrf.mxu0
    %v1210 = vadd.f32 %v1196, %v1209
    %v1211 = vpop.f32.mrf.mxu0
    %v1212 = vadd.f32 %v1198, %v1211
    %1213 = vdwg.mxu0
    %v1214 = vadd.f32 %v540, %v1210
    %v1215 = vadd.f32 %v541, %v1212
    %1216 = vst [vmem:[#allocation2] sm:$0xff] %v1214
    %1217 = vst [vmem:[#allocation2 + $0x8] sm:$0xff] %v1215
    // Predicated region
    $region42: #{tpu_custom_call.1} parent=1 // pred_check
      %p1218 = pneg %p85
    $region43: #{tpu_custom_call.1} parent=1 // pred_check_branch
      %1220 = sbr.rel (%p1218) target = $region45
    $region44: #{tpu_custom_call.1} parent=1 // pred_region
      %v1221 = vld [vmem:[#allocation2] sm:$0xff]
      %v1222 = vld [vmem:[#allocation2 + $0x8] sm:$0xff]
      %v1223 = vmul.f32 %v1221, %v1221
      %v1224 = vmul.f32 %v1222, %v1222
      %1225 = vadd.xlane.f32.xlu0 %v1223
      %v1226 = vpop.xlane.xlu0 %1225
      %1227 = vadd.xlane.f32.xlu0 %v1224
      %v1228 = vpop.xlane.xlu0 %1227
      %v1229 = vmax.f32 %v1226, 1e-30
      %v1230 = vmax.f32 %v1228, 1e-30
      %v1231 = vrsqrt.pop %v1229
      %v1232 = vmul.f32 %v1231, %v1229
      %v1233 = vmul.f32 %v1232, %v1231
      %v1234 = vmul.f32 0.5, %v1233
      %v1235 = vsub.f32 1.5, %v1234
      %v1236 = vmul.f32 %v1231, %v1235
      %vm1237 = vweird.f32 %v1229
      %vm1238 = vweird.f32 %v1231
      %vm1239 = vmor %vm1237, %vm1238
      %v1240 = vsel %vm1239, %v1231, %v1236
      %v1241 = vrsqrt.pop %v1230
      %v1242 = vmul.f32 %v1241, %v1230
      %v1243 = vmul.f32 %v1242, %v1241
      %v1244 = vmul.f32 0.5, %v1243
      %v1245 = vsub.f32 1.5, %v1244
      %v1246 = vmul.f32 %v1241, %v1245
      %vm1247 = vweird.f32 %v1230
      %vm1248 = vweird.f32 %v1241
      %vm1249 = vmor %vm1247, %vm1248
      %v1250 = vsel %vm1249, %v1241, %v1246
      %v1251 = vmul.f32 %v1221, %v1240
      %v1252 = vmul.f32 %v1222, %v1250
      %s1253 = sld [smem:[#allocation4]]
      %v1254 = vstv %s1253
      %v1255 = vmul.f32 %v1254, 1.442695
      %v1256 = vpow.pop %v1255
      %s1257 = vtos %v1256
      %v1258 = vpack.c.bf16 %v1252, %v1251
      %v1259 = vld [vmem:[#allocation3] sm:$0xf]
      %v1260 = vld [vmem:[#allocation3 + $0x4] sm:$0xf]
      %v1261 = vld [vmem:[#allocation3 + $0x8] sm:$0xf]
      %v1262 = vld [vmem:[#allocation3 + $0xc] sm:$0xf]
      %v1263 = vld [vmem:[#allocation3 + $0x10] sm:$0xf]
      %v1264 = vld [vmem:[#allocation3 + $0x14] sm:$0xf]
      %v1265 = vld [vmem:[#allocation3 + $0x18] sm:$0xf]
      %v1266 = vld [vmem:[#allocation3 + $0x1c] sm:$0xf]
      %v1267 = vld [vmem:[#allocation3 + $0x20] sm:$0xf]
      %v1268 = vld [vmem:[#allocation3 + $0x24] sm:$0xf]
      %v1269 = vld [vmem:[#allocation3 + $0x28] sm:$0xf]
      %v1270 = vld [vmem:[#allocation3 + $0x2c] sm:$0xf]
      %v1271 = vld [vmem:[#allocation3 + $0x30] sm:$0xf]
      %v1272 = vld [vmem:[#allocation3 + $0x34] sm:$0xf]
      %v1273 = vld [vmem:[#allocation3 + $0x38] sm:$0xf]
      %v1274 = vld [vmem:[#allocation3 + $0x3c] sm:$0xf]
      %v1291 = vunpack.c.l.b16 %v1259
      %v1292 = vunpack.c.l.b16 %v1260
      %v1293 = vunpack.c.l.b16 %v1261
      %v1294 = vunpack.c.l.b16 %v1262
      %v1295 = vunpack.c.l.b16 %v1263
      %v1296 = vunpack.c.l.b16 %v1264
      %v1297 = vunpack.c.l.b16 %v1265
      %v1298 = vunpack.c.l.b16 %v1266
      %v1299 = vunpack.c.l.b16 %v1267
      %v1300 = vunpack.c.l.b16 %v1268
      %v1301 = vunpack.c.l.b16 %v1269
      %v1302 = vunpack.c.l.b16 %v1270
      %v1303 = vunpack.c.l.b16 %v1271
      %v1304 = vunpack.c.l.b16 %v1272
      %v1305 = vunpack.c.l.b16 %v1273
      %v1306 = vunpack.c.l.b16 %v1274
      %v1307 = vpack.c.b16 %v1292, %v1291
      %v1308 = vpack.c.b16 %v1294, %v1293
      %v1309 = vpack.c.b16 %v1296, %v1295
      %v1310 = vpack.c.b16 %v1298, %v1297
      %v1311 = vpack.c.b16 %v1300, %v1299
      %v1312 = vpack.c.b16 %v1302, %v1301
      %v1313 = vpack.c.b16 %v1304, %v1303
      %v1314 = vpack.c.b16 %v1306, %v1305
      %1323 = vmatpush.bf16.xpose.msra.mxu0 %v1314
      %1324 = vmatpush.bf16.xpose.msra.mxu0 %v1313
      %1325 = vmatpush.bf16.xpose.msra.mxu0 %v1312
      %1326 = vmatpush.bf16.xpose.msra.mxu0 %v1311
      %1327 = vmatpush.bf16.xpose.msra.mxu0 %v1310
      %1328 = vmatpush.bf16.xpose.msra.mxu0 %v1309
      %1329 = vmatpush.bf16.xpose.msra.mxu0 %v1308
      %1330 = vmatpush.bf16.xpose.msra.mxu0 %v1307
      %1331 = vmatmul.bf16.gmra.mxu0 %v1258
      %v1332 = vpop.f32.mrf.mxu0
      %v1333 = vadd.f32 0.0, %v1332
      %v1334 = vpop.f32.mrf.mxu0
      %v1335 = vadd.f32 0.0, %v1334
      %1336 = vdwg.mxu0
      %v1337 = vstv %s1257
      %v1338 = vmul.f32 %v1337, %v1333
      %v1339 = vmul.f32 %v1337, %v1335
      %1340 = vst [vmem:[#allocation13] sm:$0xff] %v1338
      %1341 = vst [vmem:[#allocation13 + $0x8] sm:$0xff] %v1339
    $region45: #{tpu_custom_call.1} parent=1 // pred_fallthru
      _
    // Predicated region
    $region46: #{tpu_custom_call.1} parent=1 // pred_check
      _
    $region47: #{tpu_custom_call.1} parent=1 // pred_check_branch
      %1343 = sbr.rel (0) target = $region49
    $region48: #{tpu_custom_call.1} parent=1 // pred_region
      %1345 = vsyncadd [#allocation7], 0
      %s1346 = sshll.u32 [#allocation13], 4
      %s1347 = int_to_ptr.vmem [resolvable:$true] %s1346
      %s1348 = sshll.u32 %s5, 4
      %s1349 = int_to_ptr.hbm [resolvable:$true] %s1348
      %1354 = dma.vmem_to_hbm [thread:$0]  %s1347, 256, %s1349, [#allocation7], 128, 128, 8
    $region49: #{tpu_custom_call.1} parent=1 // pred_fallthru
      _
    // Predicated region
    $region50: #{tpu_custom_call.1} parent=1 // pred_check
      _
    $region51: #{tpu_custom_call.1} parent=1 // pred_check_branch
      %1356 = sbr.rel (0) target = $region53
    $region52: #{tpu_custom_call.1} parent=1 // pred_region
      %1358 = dma.done [#allocation7], 256
    $region53: #{tpu_custom_call.1} parent=1 // pred_fallthru
      _
    %1359 = vsyncpa [#allocation6], 1
    %1360 = vsyncpa [#allocation9], 1
    %1361 = vsyncpa [#allocation12], 1
    %1362 = vsyncpa [#allocation7], 1

</llo_original>
